<compile_context>
chip_gen: v7x
topology: tpu7x:2x2x1
jax: 0.10.0
libtpu: 0.0.40
codegen_flags: <defaults>
</compile_context>

<pallas_src>
import functools

import jax
import jax.numpy as jnp
from jax.experimental import pallas as pl
from jax.experimental.pallas import tpu as pltpu


def _se_kernel(inv_l, x_ref, w1_ref, b1_ref, w2_ref, b2_ref, o_ref):
    # x_ref / o_ref: (Bblk, C, Lp)   — Bblk batch elements per grid step
    # w1_ref: (C, Cr), b1_ref: (1, Cr), w2_ref: (Cr, C), b2_ref: (1, C)
    xb = x_ref[...]                                                   # bind once

    # Squeeze: global average pool over L, accumulated in f32.
    # (Zero padding along L contributes 0 to the sum; inv_l uses the true L.)
    y = jnp.sum(xb, axis=-1, dtype=jnp.float32) * inv_l               # (Bblk, C)

    # Excite: two small fully-connected layers, batched over Bblk (f32).
    h = jnp.dot(y, w1_ref[...], preferred_element_type=jnp.float32) + b1_ref[...]
    h = jnp.maximum(h, 0.0)                                           # ReLU
    s = jnp.dot(h, w2_ref[...], preferred_element_type=jnp.float32) + b2_ref[...]
    s = jax.nn.sigmoid(s)                                             # (Bblk, C)

    # Scale: cast the gate once, broadcast once, multiply the native-dtype block.
    gate = s.astype(o_ref.dtype)[:, :, None]                          # (Bblk, C, 1)
    o_ref[...] = xb * gate


def _pick_bblk(B, per_example_bytes, vmem_limit, weight_bytes):
    """Largest divisor of B whose block fits VMEM (double-buffered in+out) and
    keeps the grid at >= 2 steps when B >= 2 (megacore split on v7x)."""
    slack = 2 << 20
    budget = max(vmem_limit - weight_bytes - slack, per_example_bytes * 4)
    max_bblk_vmem = max(1, budget // (4 * per_example_bytes))
    max_bblk_grid = max(1, B // 2) if B >= 2 else 1
    cap = int(min(max_bblk_vmem, max_bblk_grid, B))
    for bblk in range(cap, 0, -1):
        if B % bblk == 0:
            return bblk
    return 1


def se_layer(x, w1, b1, w2, b2):
    """x: (B, C, L); w1: (C, Cr); b1: (Cr,); w2: (Cr, C); b2: (C,).

    Weights are passed pre-transposed as (in, out) so the kernel does y @ W + b.
    """
    B, C, L = x.shape
    Cr = w1.shape[1]

    # Lane-dense stores: pad L up to a multiple of 128 (zeros don't perturb the
    # mean because the kernel divides by the true L).
    Lp = ((L + 127) // 128) * 128
    x_in = x if Lp == L else jnp.pad(x, ((0, 0), (0, 0), (0, Lp - L)))

    b1_2d = b1.reshape(1, Cr)
    b2_2d = b2.reshape(1, C)

    itemsize = jnp.dtype(x.dtype).itemsize
    per_example_bytes = C * Lp * itemsize
    weight_bytes = (C * Cr + Cr + Cr * C + C) * 4

    # Generation-aware VMEM budget (~0.75x of the chip's actual VMEM capacity:
    # ≈96 MiB on v5e/v6e, ≈48 MiB on v7x).
    try:
        vmem_cap = int(pltpu.get_tpu_info().vmem_capacity_bytes)
    except Exception:
        vmem_cap = 64 << 20  # conservative fallback (v7x-sized)
    vmem_budget = int(0.75 * vmem_cap)

    Bblk = _pick_bblk(B, per_example_bytes, vmem_budget, weight_bytes)
    grid_len = B // Bblk

    block_bytes = Bblk * per_example_bytes
    vmem_needed = 4 * block_bytes + weight_bytes + (2 << 20)
    vmem_limit = int(min(max(vmem_needed, 32 << 20), vmem_budget))

    cost = pl.CostEstimate(
        flops=B * (2 * C * Lp + 4 * C * Cr),     # pool adds + scale muls + 2 FCs
        transcendentals=B * C,                   # sigmoid
        bytes_accessed=2 * B * C * Lp * itemsize + weight_bytes,
    )

    out = pl.pallas_call(
        functools.partial(_se_kernel, 1.0 / L),
        out_shape=jax.ShapeDtypeStruct((B, C, Lp), x.dtype),
        grid_spec=pltpu.PrefetchScalarGridSpec(
            num_scalar_prefetch=0,
            grid=(grid_len,),
            in_specs=[
                pl.BlockSpec((Bblk, C, Lp), lambda b: (b, 0, 0)),  # x: Bblk batch/step
                pl.BlockSpec((C, Cr), lambda b: (0, 0)),           # w1 (resident)
                pl.BlockSpec((1, Cr), lambda b: (0, 0)),           # b1 (resident)
                pl.BlockSpec((Cr, C), lambda b: (0, 0)),           # w2 (resident)
                pl.BlockSpec((1, C), lambda b: (0, 0)),            # b2 (resident)
            ],
            out_specs=pl.BlockSpec((Bblk, C, Lp), lambda b: (b, 0, 0)),
        ),
        compiler_params=pltpu.CompilerParams(
            dimension_semantics=("parallel",),   # megacore: split batch across TCs (v7x)
            vmem_limit_bytes=vmem_limit,
        ),
        cost_estimate=cost,
    )(x_in, w1, b1_2d, w2, b2_2d)

    if Lp != L:
        out = out[:, :, :L]
    return out


def reference(x, w1, b1, w2, b2):
    y = jnp.mean(x, axis=-1)
    h = jnp.maximum(y @ w1 + b1, 0.0)
    s = jax.nn.sigmoid(h @ w2 + b2)
    return x * s[:, :, None]


if __name__ == "__main__":
    # Small but representative shapes: L = 128 keeps the last dim a multiple of
    # 128 so the output store is lane-dense (unmasked vst).
    B, C, L = 4, 32, 128
    reduction = 8
    Cr = C // reduction

    key = jax.random.PRNGKey(0)
    kx, k1, k2, k3, k4 = jax.random.split(key, 5)

    x = jax.random.normal(kx, (B, C, L), dtype=jnp.float32)
    # nn.Linear(C, Cr) / nn.Linear(Cr, C) weights, stored pre-transposed (in, out).
    w1 = jax.random.normal(k1, (C, Cr), dtype=jnp.float32) * 0.1
    b1 = jax.random.normal(k2, (Cr,), dtype=jnp.float32) * 0.1
    w2 = jax.random.normal(k3, (Cr, C), dtype=jnp.float32) * 0.1
    b2 = jax.random.normal(k4, (C,), dtype=jnp.float32) * 0.1

    out = jax.jit(se_layer)(x, w1, b1, w2, b2)
    jax.block_until_ready(out)

    ref = reference(x, w1, b1, w2, b2)
    assert out.shape == (B, C, L)
    assert jnp.allclose(out, ref, atol=1e-5, rtol=1e-5), "mismatch vs reference"

    print("KERNEL_OK")
</pallas_src>

<mosaic_0001>
module attributes {stable_mosaic.version = 11 : i64} {
  func.func @_se_kernel(%arg0: i32, %arg1: memref<2x32x128xf32, #tpu.memory_space<vmem>>, %arg2: memref<32x4xf32, #tpu.memory_space<vmem>>, %arg3: memref<1x4xf32, #tpu.memory_space<vmem>>, %arg4: memref<4x32xf32, #tpu.memory_space<vmem>>, %arg5: memref<1x32xf32, #tpu.memory_space<vmem>>, %arg6: memref<2x32x128xf32, #tpu.memory_space<vmem>>) attributes {dimension_semantics = [#tpu.dimension_semantics<parallel>], iteration_bounds = array<i64: 2>, scalar_prefetch = 0 : i64, scratch_operands = 0 : i64, tpu.core_type = #tpu.core_type<tc>, window_params = [{transform_indices = @transform_0, window_bounds = array<i64: 2, 32, 128>}, {pipeline_mode = #tpu.pipeline_mode<synchronous>, transform_indices = @transform_1, window_bounds = array<i64: 32, 4>}, {pipeline_mode = #tpu.pipeline_mode<synchronous>, transform_indices = @transform_2, window_bounds = array<i64: 1, 4>}, {pipeline_mode = #tpu.pipeline_mode<synchronous>, transform_indices = @transform_3, window_bounds = array<i64: 4, 32>}, {pipeline_mode = #tpu.pipeline_mode<synchronous>, transform_indices = @transform_4, window_bounds = array<i64: 1, 32>}, {transform_indices = @transform_5, window_bounds = array<i64: 2, 32, 128>}]} {
    %c0 = arith.constant 0 : index
    %c0_0 = arith.constant 0 : index
    %c0_1 = arith.constant 0 : index
    %0 = vector.load %arg1[%c0, %c0_0, %c0_1] : memref<2x32x128xf32, #tpu.memory_space<vmem>>, vector<2x32x128xf32>
    %cst = arith.constant dense<0.000000e+00> : vector<2x32xf32>
    %1 = vector.multi_reduction <add>, %0, %cst [2] : vector<2x32x128xf32> to vector<2x32xf32>
    %cst_2 = arith.constant 7.812500e-03 : f32
    %2 = vector.broadcast %cst_2 : f32 to vector<2x32xf32>
    %3 = arith.mulf %1, %2 : vector<2x32xf32>
    %c0_3 = arith.constant 0 : index
    %c0_4 = arith.constant 0 : index
    %4 = vector.load %arg2[%c0_3, %c0_4] : memref<32x4xf32, #tpu.memory_space<vmem>>, vector<32x4xf32>
    %cst_5 = arith.constant dense<0.000000e+00> : vector<2x4xf32>
    %5 = tpu.matmul %3, %4, %cst_5 {dimension_numbers = #tpu.dot_dimension_numbers<[1], [0], [0], [1], [0, 0, 1, 1], [], []>} : vector<2x32xf32>, vector<32x4xf32>, vector<2x4xf32> -> vector<2x4xf32>
    %c0_6 = arith.constant 0 : index
    %c0_7 = arith.constant 0 : index
    %6 = vector.load %arg3[%c0_6, %c0_7] : memref<1x4xf32, #tpu.memory_space<vmem>>, vector<1x4xf32>
    %7 = vector.broadcast %6 : vector<1x4xf32> to vector<2x4xf32>
    %8 = arith.addf %5, %7 : vector<2x4xf32>
    %cst_8 = arith.constant 0.000000e+00 : f32
    %9 = vector.broadcast %cst_8 : f32 to vector<2x4xf32>
    %10 = arith.maximumf %8, %9 : vector<2x4xf32>
    %c0_9 = arith.constant 0 : index
    %c0_10 = arith.constant 0 : index
    %11 = vector.load %arg4[%c0_9, %c0_10] : memref<4x32xf32, #tpu.memory_space<vmem>>, vector<4x32xf32>
    %cst_11 = arith.constant dense<0.000000e+00> : vector<2x32xf32>
    %12 = tpu.matmul %10, %11, %cst_11 {dimension_numbers = #tpu.dot_dimension_numbers<[1], [0], [0], [1], [0, 0, 1, 1], [], []>} : vector<2x4xf32>, vector<4x32xf32>, vector<2x32xf32> -> vector<2x32xf32>
    %c0_12 = arith.constant 0 : index
    %c0_13 = arith.constant 0 : index
    %13 = vector.load %arg5[%c0_12, %c0_13] : memref<1x32xf32, #tpu.memory_space<vmem>>, vector<1x32xf32>
    %14 = vector.broadcast %13 : vector<1x32xf32> to vector<2x32xf32>
    %15 = arith.addf %12, %14 : vector<2x32xf32>
    %16 = arith.negf %15 : vector<2x32xf32>
    %17 = math.exp %16 : vector<2x32xf32>
    %cst_14 = arith.constant 1.000000e+00 : f32
    %18 = vector.broadcast %cst_14 : f32 to vector<2x32xf32>
    %19 = arith.addf %18, %17 : vector<2x32xf32>
    %20 = arith.divf %18, %19 : vector<2x32xf32>
    %21 = vector.shape_cast %20 : vector<2x32xf32> to vector<2x32x1xf32>
    %22 = vector.broadcast %21 : vector<2x32x1xf32> to vector<2x32x128xf32>
    %23 = arith.mulf %0, %22 : vector<2x32x128xf32>
    %c0_15 = arith.constant 0 : index
    %c0_16 = arith.constant 0 : index
    %c0_17 = arith.constant 0 : index
    %24 = vector.load %arg6[%c0_15, %c0_16, %c0_17] : memref<2x32x128xf32, #tpu.memory_space<vmem>>, vector<2x32x128xf32>
    tpu.vector_store %arg6[%c0_15, %c0_16, %c0_17], %23 {strides = array<i32>} : memref<2x32x128xf32, #tpu.memory_space<vmem>>, vector<2x32x128xf32>,
    return
  }
  func.func @transform_0(%arg0: i32) -> (i32, i32, i32) {
    %c0_i32 = arith.constant 0 : i32
    %c0_i32_0 = arith.constant 0 : i32
    %c0_i32_1 = arith.constant 0 : i32
    return %arg0, %c0_i32, %c0_i32_0 : i32, i32, i32
  }
  func.func @transform_1(%arg0: i32) -> (i32, i32) {
    %c0_i32 = arith.constant 0 : i32
    %c0_i32_0 = arith.constant 0 : i32
    %c0_i32_1 = arith.constant 0 : i32
    return %c0_i32, %c0_i32_0 : i32, i32
  }
  func.func @transform_2(%arg0: i32) -> (i32, i32) {
    %c0_i32 = arith.constant 0 : i32
    %c0_i32_0 = arith.constant 0 : i32
    %c0_i32_1 = arith.constant 0 : i32
    return %c0_i32, %c0_i32_0 : i32, i32
  }
  func.func @transform_3(%arg0: i32) -> (i32, i32) {
    %c0_i32 = arith.constant 0 : i32
    %c0_i32_0 = arith.constant 0 : i32
    %c0_i32_1 = arith.constant 0 : i32
    return %c0_i32, %c0_i32_0 : i32, i32
  }
  func.func @transform_4(%arg0: i32) -> (i32, i32) {
    %c0_i32 = arith.constant 0 : i32
    %c0_i32_0 = arith.constant 0 : i32
    %c0_i32_1 = arith.constant 0 : i32
    return %c0_i32, %c0_i32_0 : i32, i32
  }
  func.func @transform_5(%arg0: i32) -> (i32, i32, i32) {
    %c0_i32 = arith.constant 0 : i32
    %c0_i32_0 = arith.constant 0 : i32
    %c0_i32_1 = arith.constant 0 : i32
    return %arg0, %c0_i32, %c0_i32_0 : i32, i32, i32
  }
}

</mosaic_0001>

<llo_original>
// kernel: se_layer.1
$region0: #{se_layer.1}
  #allocation0 [shape = 'u32[]', space=smem, size = 0x4, offset = 0x4, fixed_abs, tag = 'smem constant byte address 0x4 - core index']
  #allocation1 [shape = 'u32[144,128]{1,0:T(1,128)}', space=vmem, size = 0x12000, scoped, tag = 'internal scratch']
  %s0 = inlined_call_operand.hbm [shape: f32[4,32,128], index: 0, kind: input, shape index: {}]
  %s1 = inlined_call_operand.vmem [shape: f32[32,4], index: 1, kind: input, shape index: {}]
  %s2 = inlined_call_operand.vmem [shape: f32[1,4], index: 2, kind: input, shape index: {}]
  %s3 = inlined_call_operand.vmem [shape: f32[4,32], index: 3, kind: input, shape index: {}]
  %s4 = inlined_call_operand.vmem [shape: f32[1,32], index: 4, kind: input, shape index: {}]
  %s5 = inlined_call_operand.hbm [shape: f32[4,32,128], index: 5, kind: output, shape index: {}]
  %s6 = sld [smem:[#allocation0]]
  $region57: #{se_layer.1} parent=0
    _
  %s8 = ssub.s32 1, %s6
  %s9 = scalar_select 0, %s8, %s6
  $region1: #{se_layer.1} parent=0
    #allocation2 [shape = 'u8[65536]{0}', space=vmem, size = 0x10000, scoped, tag = 'input window, operand 0']
    #allocation3 [shape = 's32[2]{0}', space=sflag, size = 0x8, scoped, tag = 'scoped memory for se_layer.1']
    #allocation4 [shape = 's32[2]{0}', space=sflag, size = 0x8, scoped, tag = 'scoped memory for se_layer.1']
    #allocation5 [shape = 'u8[65536]{0}', space=vmem, size = 0x10000, scoped, tag = 'output window, operand 0']
    %10 = vsyncpa [#allocation3], 0
    %s11 = scalar_lea.sflag [#allocation3], 1
    %12 = vsyncpa %s11, 0
    %13 = vsyncpa [#allocation4], 0
    %s14 = scalar_lea.sflag [#allocation4], 1
    %15 = vsyncpa %s14, 0
    loop: start=0, step=1, limit=4
    $region2: #{se_layer.1} parent=1 // loop_pre_header
      _
    $region3: #{se_layer.1} parent=1 // loop_header
      %s17 = sphi 0, %s21
      %p18 = scmp.ge.s32.totalorder %s17, 4
      %s27 = sphi 0, %s29
      %s30 = sphi 0, %s27
      %s31 = sphi 0, %s30
      %s47 = sphi 0, %s31
      %s51 = sphi 0, %s51
      %s53 = sphi 0, %s51
      %s54 = sphi 0, %s53
      %s68 = sphi 0, %s54
      %s72 = sphi 0, %s72
      %s74 = sphi 0, %s72
      %s75 = sphi 0, %s74
      %s89 = sphi 0, %s75
      %s93 = sphi 0, %s93
      %s95 = sphi 0, %s93
      %s96 = sphi 0, %s95
      %s110 = sphi 0, %s96
      %s114 = sphi 0, %s114
      %s116 = sphi 0, %s114
      %s117 = sphi 0, %s116
      %s131 = sphi 0, %s117
      %s137 = sphi 0, %s139
      %s140 = sphi 0, %s137
      %s141 = sphi 0, %s140
      %s157 = sphi 0, %s141
    $region4: #{se_layer.1} parent=1 // loop_header_branch
      %20 = sbr.rel (%p18) target = $region8
    $region5: #{se_layer.1} parent=1 // loop_body
      %s22 = ssub.s32 %s17, 1
      %s23 = ssub.s32 %s17, 2
      %s24 = sadd.s32 %s17, 1
      %s25 = ssub.s32 %s17, %s24
      %p26 = scmp.eq.s32.totalorder %s25, 0
      %s28 = sadd.s32 %s27, 1
      %s29 = scalar_select %p26, %s27, %s28
      %p32 = pneg %p26
      %p33 = scmp.eq.s32.totalorder %s17, 1
      %p34 = por %p32, %p33
      %p35 = scmp.ne.s32.totalorder %s27, %s30
      %p36 = scmp.eq.s32.totalorder %s17, 0
      %p37 = por %p35, %p36
      %p38 = scmp.ne.s32.totalorder %s27, %s30
      %p39 = scmp.eq.s32.totalorder %s22, 1
      %p40 = por %p38, %p39
      %p41 = scmp.ne.s32.totalorder %s30, %s31
      %p42 = scmp.eq.s32.totalorder %s22, 0
      %p43 = por %p41, %p42
      %p44 = scmp.ne.s32.totalorder %s30, %s31
      %p45 = scmp.eq.s32.totalorder %s23, 1
      %p46 = por %p44, %p45
      %p48 = scmp.ne.s32.totalorder %s31, %s47
      %p49 = scmp.eq.s32.totalorder %s23, 0
      %p50 = por %p48, %p49
      %s52 = sadd.s32 %s51, 1
      %p55 = scmp.eq.s32.totalorder %s17, 1
      %p56 = scmp.ne.s32.totalorder %s51, %s53
      %p57 = scmp.eq.s32.totalorder %s17, 0
      %p58 = por %p56, %p57
      %p59 = scmp.ne.s32.totalorder %s51, %s53
      %p60 = scmp.eq.s32.totalorder %s22, 1
      %p61 = por %p59, %p60
      %p62 = scmp.ne.s32.totalorder %s53, %s54
      %p63 = scmp.eq.s32.totalorder %s22, 0
      %p64 = por %p62, %p63
      %p65 = scmp.ne.s32.totalorder %s53, %s54
      %p66 = scmp.eq.s32.totalorder %s23, 1
      %p67 = por %p65, %p66
      %p69 = scmp.ne.s32.totalorder %s54, %s68
      %p70 = scmp.eq.s32.totalorder %s23, 0
      %p71 = por %p69, %p70
      %s73 = sadd.s32 %s72, 1
      %p76 = scmp.eq.s32.totalorder %s17, 1
      %p77 = scmp.ne.s32.totalorder %s72, %s74
      %p78 = scmp.eq.s32.totalorder %s17, 0
      %p79 = por %p77, %p78
      %p80 = scmp.ne.s32.totalorder %s72, %s74
      %p81 = scmp.eq.s32.totalorder %s22, 1
      %p82 = por %p80, %p81
      %p83 = scmp.ne.s32.totalorder %s74, %s75
      %p84 = scmp.eq.s32.totalorder %s22, 0
      %p85 = por %p83, %p84
      %p86 = scmp.ne.s32.totalorder %s74, %s75
      %p87 = scmp.eq.s32.totalorder %s23, 1
      %p88 = por %p86, %p87
      %p90 = scmp.ne.s32.totalorder %s75, %s89
      %p91 = scmp.eq.s32.totalorder %s23, 0
      %p92 = por %p90, %p91
      %s94 = sadd.s32 %s93, 1
      %p97 = scmp.eq.s32.totalorder %s17, 1
      %p98 = scmp.ne.s32.totalorder %s93, %s95
      %p99 = scmp.eq.s32.totalorder %s17, 0
      %p100 = por %p98, %p99
      %p101 = scmp.ne.s32.totalorder %s93, %s95
      %p102 = scmp.eq.s32.totalorder %s22, 1
      %p103 = por %p101, %p102
      %p104 = scmp.ne.s32.totalorder %s95, %s96
      %p105 = scmp.eq.s32.totalorder %s22, 0
      %p106 = por %p104, %p105
      %p107 = scmp.ne.s32.totalorder %s95, %s96
      %p108 = scmp.eq.s32.totalorder %s23, 1
      %p109 = por %p107, %p108
      %p111 = scmp.ne.s32.totalorder %s96, %s110
      %p112 = scmp.eq.s32.totalorder %s23, 0
      %p113 = por %p111, %p112
      %s115 = sadd.s32 %s114, 1
      %p118 = scmp.eq.s32.totalorder %s17, 1
      %p119 = scmp.ne.s32.totalorder %s114, %s116
      %p120 = scmp.eq.s32.totalorder %s17, 0
      %p121 = por %p119, %p120
      %p122 = scmp.ne.s32.totalorder %s114, %s116
      %p123 = scmp.eq.s32.totalorder %s22, 1
      %p124 = por %p122, %p123
      %p125 = scmp.ne.s32.totalorder %s116, %s117
      %p126 = scmp.eq.s32.totalorder %s22, 0
      %p127 = por %p125, %p126
      %p128 = scmp.ne.s32.totalorder %s116, %s117
      %p129 = scmp.eq.s32.totalorder %s23, 1
      %p130 = por %p128, %p129
      %p132 = scmp.ne.s32.totalorder %s117, %s131
      %p133 = scmp.eq.s32.totalorder %s23, 0
      %p134 = por %p132, %p133
      %s135 = ssub.s32 %s17, %s24
      %p136 = scmp.eq.s32.totalorder %s135, 0
      %s138 = sadd.s32 %s137, 1
      %s139 = scalar_select %p136, %s137, %s138
      %p142 = pneg %p136
      %p143 = scmp.eq.s32.totalorder %s17, 1
      %p144 = por %p142, %p143
      %p145 = scmp.ne.s32.totalorder %s137, %s140
      %p146 = scmp.eq.s32.totalorder %s17, 0
      %p147 = por %p145, %p146
      %p148 = scmp.ne.s32.totalorder %s137, %s140
      %p149 = scmp.eq.s32.totalorder %s22, 1
      %p150 = por %p148, %p149
      %p151 = scmp.ne.s32.totalorder %s140, %s141
      %p152 = scmp.eq.s32.totalorder %s22, 0
      %p153 = por %p151, %p152
      %p154 = scmp.ne.s32.totalorder %s140, %s141
      %p155 = scmp.eq.s32.totalorder %s23, 1
      %p156 = por %p154, %p155
      %p158 = scmp.ne.s32.totalorder %s141, %s157
      %p159 = scmp.eq.s32.totalorder %s23, 0
      %p160 = por %p158, %p159
      %p161 = scmp.le.s32.totalorder 1, %s17
      %p162 = scmp.lt.s32.totalorder %s17, 3
      %p163 = pnand %p161, %p162
      %p164 = pneg %p163
      // Predicated region
      $region9: #{se_layer.1} parent=5 // pred_check
        _
      $region10: #{se_layer.1} parent=5 // pred_check_branch
        %166 = sbr.rel (%p163) target = $region12
      $region11: #{se_layer.1} parent=5 // pred_region
        %s167 = ssub.s32 %s17, 1
        // Predicated region
        $region13: #{se_layer.1} parent=11 // pred_check
          %p168 = pneg %p64
        $region14: #{se_layer.1} parent=11 // pred_check_branch
          %170 = sbr.rel (%p168) target = $region16
        $region15: #{se_layer.1} parent=11 // pred_region
          _
        $region16: #{se_layer.1} parent=11 // pred_fallthru
          _
        // Predicated region
        $region17: #{se_layer.1} parent=11 // pred_check
          %p171 = pneg %p85
        $region18: #{se_layer.1} parent=11 // pred_check_branch
          %173 = sbr.rel (%p171) target = $region20
        $region19: #{se_layer.1} parent=11 // pred_region
          _
        $region20: #{se_layer.1} parent=11 // pred_fallthru
          _
        // Predicated region
        $region21: #{se_layer.1} parent=11 // pred_check
          %p174 = pneg %p106
        $region22: #{se_layer.1} parent=11 // pred_check_branch
          %176 = sbr.rel (%p174) target = $region24
        $region23: #{se_layer.1} parent=11 // pred_region
          _
        $region24: #{se_layer.1} parent=11 // pred_fallthru
          _
        // Predicated region
        $region25: #{se_layer.1} parent=11 // pred_check
          %p177 = pneg %p127
        $region26: #{se_layer.1} parent=11 // pred_check_branch
          %179 = sbr.rel (%p177) target = $region28
        $region27: #{se_layer.1} parent=11 // pred_region
          _
        $region28: #{se_layer.1} parent=11 // pred_fallthru
          _
      $region12: #{se_layer.1} parent=5 // pred_fallthru
        _
      %p180 = scmp.lt.s32.totalorder %s17, 2
      // Predicated region
      $region29: #{se_layer.1} parent=5 // pred_check
        %p181 = pneg %p180
      $region30: #{se_layer.1} parent=5 // pred_check_branch
        %183 = sbr.rel (%p181) target = $region32
      $region31: #{se_layer.1} parent=5 // pred_region
        // Predicated region
        $region33: #{se_layer.1} parent=31 // pred_check
          %p184 = pneg %p37
        $region34: #{se_layer.1} parent=31 // pred_check_branch
          %186 = sbr.rel (%p184) target = $region36
        $region35: #{se_layer.1} parent=31 // pred_region
          %s187 = sand.u32 %s27, 1
          %s188 = scalar_lea.sflag [#allocation3], %s187
          %s189 = sand.u32 %s27, 1
          %s190 = smul.addr %s189, 64
          %s191 = scalar_lea.vmem [#allocation2], %s190
          %s192 = smul.u32 2, %s17
          %s194 = ssub.s32 1024, 1024
          %195 = vsyncadd %s188, %s194
          %s196 = smul.addr %s192, 4
          %s197 = smul.addr %s196, 128
          %s198 = scalar_lea.hbm %s0, %s197
          %s199 = sshll.u32 %s191, 4
          %s200 = int_to_ptr.vmem [resolvable:$true] %s199
          %205 = dma.hbm_to_vmem [thread:$0]  %s198, 1024, %s200, %s188, 128, 128, 8
        $region36: #{se_layer.1} parent=31 // pred_fallthru
          _
      $region32: #{se_layer.1} parent=5 // pred_fallthru
        _
      %p206 = scmp.le.s32.totalorder 1, %s17
      %p207 = scmp.lt.s32.totalorder %s17, 3
      %p208 = pnand %p206, %p207
      %p209 = pneg %p208
      // Predicated region
      $region37: #{se_layer.1} parent=5 // pred_check
        _
      $region38: #{se_layer.1} parent=5 // pred_check_branch
        %211 = sbr.rel (%p208) target = $region40
      $region39: #{se_layer.1} parent=5 // pred_region
        %s212 = ssub.s32 %s17, 1
        %s213 = sand.u32 %s30, 1
        %s214 = scalar_lea.sflag [#allocation3], %s213
        %s215 = sand.u32 %s30, 1
        %s216 = smul.addr %s215, 64
        %s217 = scalar_lea.vmem [#allocation2], %s216
        // Predicated region
        $region41: #{se_layer.1} parent=39 // pred_check
          %p218 = pneg %p43
        $region42: #{se_layer.1} parent=39 // pred_check_branch
          %220 = sbr.rel (%p218) target = $region44
        $region43: #{se_layer.1} parent=39 // pred_region
          %221 = dma.done %s214, 1024
        $region44: #{se_layer.1} parent=39 // pred_fallthru
          _
        %s222 = sand.u32 %s30, 1
        %s223 = scalar_lea.sflag [#allocation3], %s222
        %s224 = sand.u32 %s30, 1
        %s225 = smul.addr %s224, 64
        %s226 = scalar_lea.vmem [#allocation2], %s225
        %p227 = pneg %p43
        %p228 = pneg %p40
        %p229 = pneg %p64
        %p230 = pneg %p61
        %p231 = pneg %p85
        %p232 = pneg %p82
        %p233 = pneg %p106
        %p234 = pneg %p103
        %p235 = pneg %p127
        %p236 = pneg %p124
        %p237 = pneg %p153
        %p238 = pneg %p150
        %s239 = sand.u32 %s140, 1
        %s240 = scalar_lea.sflag [#allocation4], %s239
        %s241 = sand.u32 %s140, 1
        %s242 = smul.addr %s241, 64
        %s243 = scalar_lea.vmem [#allocation5], %s242
        %s244 = smul.u32 2, %s22
        %s245 = smul.u32 2, %s22
        %v246 = vld [vmem:[%s217] sm:$0xff]
        %v247 = vld [vmem:[%s217 + $0x8] sm:$0xff]
        %v248 = vld [vmem:[%s217 + $0x10] sm:$0xff]
        %v249 = vld [vmem:[%s217 + $0x18] sm:$0xff]
        %v250 = vld [vmem:[%s217 + $0x20] sm:$0xff]
        %v251 = vld [vmem:[%s217 + $0x28] sm:$0xff]
        %v252 = vld [vmem:[%s217 + $0x30] sm:$0xff]
        %v253 = vld [vmem:[%s217 + $0x38] sm:$0xff]
        %254 = vadd.xlane.f32.xlu0 %v246
        %v255 = vpop.xlane.xlu0 %254
        %256 = vadd.xlane.f32.xlu0 %v247
        %v257 = vpop.xlane.xlu0 %256
        %258 = vadd.xlane.f32.xlu0 %v248
        %v259 = vpop.xlane.xlu0 %258
        %260 = vadd.xlane.f32.xlu0 %v249
        %v261 = vpop.xlane.xlu0 %260
        %262 = vadd.xlane.f32.xlu0 %v250
        %v263 = vpop.xlane.xlu0 %262
        %264 = vadd.xlane.f32.xlu0 %v251
        %v265 = vpop.xlane.xlu0 %264
        %266 = vadd.xlane.f32.xlu0 %v252
        %v267 = vpop.xlane.xlu0 %266
        %268 = vadd.xlane.f32.xlu0 %v253
        %v269 = vpop.xlane.xlu0 %268
        %v270 = vmul.f32 %v255, 0.0078125
        %v271 = vmul.f32 %v257, 0.0078125
        %v272 = vmul.f32 %v259, 0.0078125
        %v273 = vmul.f32 %v261, 0.0078125
        %v274 = vmul.f32 %v263, 0.0078125
        %v275 = vmul.f32 %v265, 0.0078125
        %v276 = vmul.f32 %v267, 0.0078125
        %v277 = vmul.f32 %v269, 0.0078125
        %v278 = vld [vmem:[%s1] sm:$0xff]
        %v279 = vld [vmem:[%s1 + $0x8] sm:$0xff]
        %v280 = vld [vmem:[%s1 + $0x10] sm:$0xff]
        %v281 = vld [vmem:[%s1 + $0x18] sm:$0xff]
        %v282 = vld [vmem:[%s2] sm:$0x1]
        %v284 = vlaneseq
        %v285 = vshrl.u32 %v284, 7
        %v286 = vsub.s32 0, %v285
        %v287 = vrot.slane %v282, %v286
        %v297 = vlaneseq
        %v298 = vand.u32 %v297, 127
        %v299 = vlaneseq
        %v300 = vshrl.u32 %v299, 7
        %v301 = vsub.s32 %v298, %v300
        %v302 = vrot.slane %v270, %v301
        %v303 = vadd.s32 %v298, 4294967288
        %v304 = vlaneseq
        %v305 = vshrl.u32 %v304, 7
        %v306 = vsub.s32 %v303, %v305
        %v307 = vrot.slane %v271, %v306
        %vm308 = vcmask 130112
        %v309 = vsel %vm308, %v307, %v302
        %v310 = vadd.s32 %v298, 4294967280
        %v311 = vlaneseq
        %v312 = vshrl.u32 %v311, 7
        %v313 = vsub.s32 %v310, %v312
        %v314 = vrot.slane %v272, %v313
        %vm315 = vcmask 195712
        %v316 = vsel %vm315, %v314, %v309
        %v317 = vadd.s32 %v298, 4294967272
        %v318 = vlaneseq
        %v319 = vshrl.u32 %v318, 7
        %v320 = vsub.s32 %v317, %v319
        %v321 = vrot.slane %v273, %v320
        %vm322 = vcmask 261312
        %v323 = vsel %vm322, %v321, %v316
        %v324 = vlaneseq
        %v325 = vshrl.u32 %v324, 7
        %v326 = vsub.s32 %v298, %v325
        %v327 = vrot.slane %v274, %v326
        %v328 = vlaneseq
        %v329 = vshrl.u32 %v328, 7
        %v330 = vsub.s32 %v303, %v329
        %v331 = vrot.slane %v275, %v330
        %v332 = vsel %vm308, %v331, %v327
        %v333 = vlaneseq
        %v334 = vshrl.u32 %v333, 7
        %v335 = vsub.s32 %v310, %v334
        %v336 = vrot.slane %v276, %v335
        %v337 = vsel %vm315, %v336, %v332
        %v338 = vlaneseq
        %v339 = vshrl.u32 %v338, 7
        %v340 = vsub.s32 %v317, %v339
        %v341 = vrot.slane %v277, %v340
        %v342 = vsel %vm322, %v341, %v337
        %vm343 = vcmask 1041409
        %v344 = vsel %vm343, %v342, %v323
        %vm345 = vcmask 261120
        %v346 = vsel %vm345, %v344, 0
        %348 = vmatprep.subr.mxu0 0.0
        %349 = vmatpush1.msra.mxu0 %v278
        %350 = vmatprep.subr.mxu0 0.0
        %351 = vmatpush1.msra.mxu0 %v279
        %352 = vmatprep.subr.mxu0 0.0
        %353 = vmatpush1.msra.mxu0 %v280
        %354 = vmatprep.subr.mxu0 0.0
        %355 = vmatpush1.msra.mxu0 %v281
        %356 = vmatprep.subr.mxu0 0.0
        %357 = vmatpush1.msra.mxu0 0.0
        %358 = vmatprep.subr.mxu0 0.0
        %359 = vmatpush1.msra.mxu0 0.0
        %360 = vmatprep.subr.mxu0 0.0
        %361 = vmatpush1.msra.mxu0 0.0
        %362 = vmatprep.subr.mxu0 0.0
        %363 = vmatpush1.msra.mxu0 0.0
        %364 = vmatprep.subr.mxu0 0.0
        %365 = vmatpush1.msra.mxu0 0.0
        %366 = vmatprep.subr.mxu0 0.0
        %367 = vmatpush1.msra.mxu0 0.0
        %368 = vmatprep.subr.mxu0 0.0
        %369 = vmatpush1.msra.mxu0 0.0
        %370 = vmatprep.subr.mxu0 0.0
        %371 = vmatpush1.msra.mxu0 0.0
        %372 = vmatprep.subr.mxu0 0.0
        %373 = vmatpush1.msra.mxu0 0.0
        %374 = vmatprep.subr.mxu0 0.0
        %375 = vmatpush1.msra.mxu0 0.0
        %376 = vmatprep.subr.mxu0 0.0
        %377 = vmatpush1.msra.mxu0 0.0
        %378 = vmatprep.subr.mxu0 0.0
        %379 = vmatpush1.msra.mxu0 0.0
        %380 = vmatprep.subr.mxu0 0.0
        %381 = vmatpush1.msra.mxu0 0.0
        %382 = vmatprep.subr.mxu0 0.0
        %383 = vmatpush1.msra.mxu0 0.0
        %384 = vmatprep.subr.mxu0 0.0
        %385 = vmatpush1.msra.mxu0 0.0
        %386 = vmatprep.subr.mxu0 0.0
        %387 = vmatpush1.msra.mxu0 0.0
        %388 = vmatprep.subr.mxu0 0.0
        %389 = vmatpush1.msra.mxu0 0.0
        %390 = vmatprep.subr.mxu0 0.0
        %391 = vmatpush1.msra.mxu0 0.0
        %392 = vmatprep.subr.mxu0 0.0
        %393 = vmatpush1.msra.mxu0 0.0
        %394 = vmatprep.subr.mxu0 0.0
        %395 = vmatpush1.msra.mxu0 0.0
        %396 = vmatprep.subr.mxu0 0.0
        %397 = vmatpush1.msra.mxu0 0.0
        %398 = vmatprep.subr.mxu0 0.0
        %399 = vmatpush1.msra.mxu0 0.0
        %400 = vmatprep.subr.mxu0 0.0
        %401 = vmatpush1.msra.mxu0 0.0
        %402 = vmatprep.subr.mxu0 0.0
        %403 = vmatpush1.msra.mxu0 0.0
        %404 = vmatprep.subr.mxu0 0.0
        %405 = vmatpush1.msra.mxu0 0.0
        %406 = vmatprep.subr.mxu0 0.0
        %407 = vmatpush1.msra.mxu0 0.0
        %408 = vmatprep.subr.mxu0 0.0
        %409 = vmatpush1.msra.mxu0 0.0
        %410 = vmatprep.subr.mxu0 0.0
        %411 = vmatpush1.msra.mxu0 0.0
        %412 = vmatprep.mubr.f32.mxu0 0.0
        %413 = vmatmul.mubr.f32.gmra.mrb[0].mxu0 %v346
        %v414 = vpop.f32.mrb[0].mxu0
        %v415 = vadd.f32 %v287, %v414
        %v416 = vpop.f32.mrb[0].mxu0
        %417 = vdwg.mxu0
        %v418 = vmax.f32 %v415, 0.0
        %v419 = vld [vmem:[%s3] sm:$0xf]
        %v420 = vld [vmem:[%s4] sm:$0x1]
        %v422 = vlaneseq
        %v423 = vshrl.u32 %v422, 7
        %v424 = vsub.s32 0, %v423
        %v425 = vrot.slane %v420, %v424
        %vm427 = vcmask 31744
        %v429 = vsel %vm427, %v418, 0
        %vm431 = vcmask 1043456
        %v433 = vsel %vm431, %v419, 0
        %435 = vmatprep.subr.mxu0 0.0
        %436 = vmatpush1.msra.mxu0 %v433
        %437 = vmatprep.subr.mxu0 0.0
        %438 = vmatpush1.msra.mxu0 0.0
        %439 = vmatprep.subr.mxu0 0.0
        %440 = vmatpush1.msra.mxu0 0.0
        %441 = vmatprep.subr.mxu0 0.0
        %442 = vmatpush1.msra.mxu0 0.0
        %443 = vmatprep.subr.mxu0 0.0
        %444 = vmatpush1.msra.mxu0 0.0
        %445 = vmatprep.subr.mxu0 0.0
        %446 = vmatpush1.msra.mxu0 0.0
        %447 = vmatprep.subr.mxu0 0.0
        %448 = vmatpush1.msra.mxu0 0.0
        %449 = vmatprep.subr.mxu0 0.0
        %450 = vmatpush1.msra.mxu0 0.0
        %451 = vmatprep.subr.mxu0 0.0
        %452 = vmatpush1.msra.mxu0 0.0
        %453 = vmatprep.subr.mxu0 0.0
        %454 = vmatpush1.msra.mxu0 0.0
        %455 = vmatprep.subr.mxu0 0.0
        %456 = vmatpush1.msra.mxu0 0.0
        %457 = vmatprep.subr.mxu0 0.0
        %458 = vmatpush1.msra.mxu0 0.0
        %459 = vmatprep.subr.mxu0 0.0
        %460 = vmatpush1.msra.mxu0 0.0
        %461 = vmatprep.subr.mxu0 0.0
        %462 = vmatpush1.msra.mxu0 0.0
        %463 = vmatprep.subr.mxu0 0.0
        %464 = vmatpush1.msra.mxu0 0.0
        %465 = vmatprep.subr.mxu0 0.0
        %466 = vmatpush1.msra.mxu0 0.0
        %467 = vmatprep.subr.mxu0 0.0
        %468 = vmatpush1.msra.mxu0 0.0
        %469 = vmatprep.subr.mxu0 0.0
        %470 = vmatpush1.msra.mxu0 0.0
        %471 = vmatprep.subr.mxu0 0.0
        %472 = vmatpush1.msra.mxu0 0.0
        %473 = vmatprep.subr.mxu0 0.0
        %474 = vmatpush1.msra.mxu0 0.0
        %475 = vmatprep.subr.mxu0 0.0
        %476 = vmatpush1.msra.mxu0 0.0
        %477 = vmatprep.subr.mxu0 0.0
        %478 = vmatpush1.msra.mxu0 0.0
        %479 = vmatprep.subr.mxu0 0.0
        %480 = vmatpush1.msra.mxu0 0.0
        %481 = vmatprep.subr.mxu0 0.0
        %482 = vmatpush1.msra.mxu0 0.0
        %483 = vmatprep.subr.mxu0 0.0
        %484 = vmatpush1.msra.mxu0 0.0
        %485 = vmatprep.subr.mxu0 0.0
        %486 = vmatpush1.msra.mxu0 0.0
        %487 = vmatprep.subr.mxu0 0.0
        %488 = vmatpush1.msra.mxu0 0.0
        %489 = vmatprep.subr.mxu0 0.0
        %490 = vmatpush1.msra.mxu0 0.0
        %491 = vmatprep.subr.mxu0 0.0
        %492 = vmatpush1.msra.mxu0 0.0
        %493 = vmatprep.subr.mxu0 0.0
        %494 = vmatpush1.msra.mxu0 0.0
        %495 = vmatprep.subr.mxu0 0.0
        %496 = vmatpush1.msra.mxu0 0.0
        %497 = vmatprep.subr.mxu0 0.0
        %498 = vmatpush1.msra.mxu0 0.0
        %499 = vmatprep.mubr.f32.mxu0 0.0
        %500 = vmatmul.mubr.f32.gmra.mrb[0].mxu0 %v429
        %v501 = vpop.f32.mrb[0].mxu0
        %v502 = vadd.f32 %v425, %v501
        %v503 = vpop.f32.mrb[0].mxu0
        %504 = vdwg.mxu0
        %v505 = vxor.u32 %v502, 2147483648
        %v506 = vmul.f32 %v505, 1.442695
        %v507 = vpow.pop %v506
        %v508 = vadd.f32 %v507, 1.0
        %v509 = vrcp.pop %v508
        %v510 = vmul.f32 1.0, %v509
        %v511 = vlaneseq
        %v512 = vshrl.u32 %v511, 7
        %v513 = vsub.s32 0, %v512
        %v514 = vrot.slane %v510, %v513
        %516 = vbcast.lane.b32.xlu0 %v514, 256
        %v517 = vpop.permute.xlu0 %516
        %s519 = sor.u32 256, 8
        %520 = vbcast.lane.b32.xlu0 %v514, %s519
        %v521 = vpop.permute.xlu0 %520
        %s523 = sor.u32 256, 16
        %524 = vbcast.lane.b32.xlu0 %v514, %s523
        %v525 = vpop.permute.xlu0 %524
        %s527 = sor.u32 256, 24
        %528 = vbcast.lane.b32.xlu0 %v514, %s527
        %v529 = vpop.permute.xlu0 %528
        %v530 = vlaneseq
        %v531 = vshrl.u32 %v530, 7
        %v532 = vsub.s32 1, %v531
        %v533 = vrot.slane %v510, %v532
        %535 = vbcast.lane.b32.xlu0 %v533, 256
        %v536 = vpop.permute.xlu0 %535
        %s538 = sor.u32 256, 8
        %539 = vbcast.lane.b32.xlu0 %v533, %s538
        %v540 = vpop.permute.xlu0 %539
        %s542 = sor.u32 256, 16
        %543 = vbcast.lane.b32.xlu0 %v533, %s542
        %v544 = vpop.permute.xlu0 %543
        %s546 = sor.u32 256, 24
        %547 = vbcast.lane.b32.xlu0 %v533, %s546
        %v548 = vpop.permute.xlu0 %547
        %v549 = vmul.f32 %v246, %v517
        %v550 = vmul.f32 %v247, %v521
        %v551 = vmul.f32 %v248, %v525
        %v552 = vmul.f32 %v249, %v529
        %v553 = vmul.f32 %v250, %v536
        %v554 = vmul.f32 %v251, %v540
        %v555 = vmul.f32 %v252, %v544
        %v556 = vmul.f32 %v253, %v548
        %557 = vst [vmem:[%s243] sm:$0xff] %v549
        %558 = vst [vmem:[%s243 + $0x8] sm:$0xff] %v550
        %559 = vst [vmem:[%s243 + $0x10] sm:$0xff] %v551
        %560 = vst [vmem:[%s243 + $0x18] sm:$0xff] %v552
        %561 = vst [vmem:[%s243 + $0x20] sm:$0xff] %v553
        %562 = vst [vmem:[%s243 + $0x28] sm:$0xff] %v554
        %563 = vst [vmem:[%s243 + $0x30] sm:$0xff] %v555
        %564 = vst [vmem:[%s243 + $0x38] sm:$0xff] %v556
        %s565 = sand.u32 %s140, 1
        %s566 = scalar_lea.sflag [#allocation4], %s565
        %s567 = sand.u32 %s140, 1
        %s568 = smul.addr %s567, 64
        %s569 = scalar_lea.vmem [#allocation5], %s568
        // Predicated region
        $region45: #{se_layer.1} parent=39 // pred_check
          %p570 = pneg %p150
        $region46: #{se_layer.1} parent=39 // pred_check_branch
          %572 = sbr.rel (%p570) target = $region48
        $region47: #{se_layer.1} parent=39 // pred_region
          %s573 = smul.u32 2, %s22
          %s575 = ssub.s32 1024, 1024
          %576 = vsyncadd %s566, %s575
          %s577 = smul.addr %s573, 4
          %s578 = smul.addr %s577, 128
          %s579 = scalar_lea.hbm %s5, %s578
          %s580 = sshll.u32 %s569, 4
          %s581 = int_to_ptr.vmem [resolvable:$true] %s580
          %586 = dma.vmem_to_hbm [thread:$0]  %s581, 1024, %s579, %s566, 128, 128, 8
        $region48: #{se_layer.1} parent=39 // pred_fallthru
          _
      $region40: #{se_layer.1} parent=5 // pred_fallthru
        _
      %p587 = scmp.le.s32.totalorder 2, %s17
      // Predicated region
      $region49: #{se_layer.1} parent=5 // pred_check
        %p588 = pneg %p587
      $region50: #{se_layer.1} parent=5 // pred_check_branch
        %590 = sbr.rel (%p588) target = $region52
      $region51: #{se_layer.1} parent=5 // pred_region
        %s591 = ssub.s32 %s17, 2
        // Predicated region
        $region53: #{se_layer.1} parent=51 // pred_check
          %p592 = pneg %p156
        $region54: #{se_layer.1} parent=51 // pred_check_branch
          %594 = sbr.rel (%p592) target = $region56
        $region55: #{se_layer.1} parent=51 // pred_region
          %s595 = sand.u32 %s141, 1
          %s596 = scalar_lea.sflag [#allocation4], %s595
          %s597 = sand.u32 %s141, 1
          %s598 = smul.addr %s597, 64
          %s599 = scalar_lea.vmem [#allocation5], %s598
          %600 = dma.done %s596, 1024
        $region56: #{se_layer.1} parent=51 // pred_fallthru
          _
      $region52: #{se_layer.1} parent=5 // pred_fallthru
        _
    $region6: #{se_layer.1} parent=1 // loop_footer
      %s21 = sadd.s32 1, %s17
    $region7: #{se_layer.1} parent=1 // loop_footer_branch
      %16 = sbr.rel target = $region3
    $region8: #{se_layer.1} parent=1 // loop_exit
      _
    %601 = vsyncpa [#allocation3], 1
    %s602 = scalar_lea.sflag [#allocation3], 1
    %603 = vsyncpa %s602, 1
    %604 = vsyncpa [#allocation4], 1
    %s605 = scalar_lea.sflag [#allocation4], 1
    %606 = vsyncpa %s605, 1

</llo_original>
